<compile_context>
chip_gen: v7x
topology: tpu7x:2x2x1
jax: 0.10.0
libtpu: 0.0.40
codegen_flags: <defaults>
</compile_context>

<pallas_src>
import jax
import jax.numpy as jnp
from jax import lax
from jax.experimental import pallas as pl
from jax.experimental.pallas import tpu as pltpu


def _round_up(a: int, b: int) -> int:
    return (a + b - 1) // b * b


def _choose_row_tile(n: int, block_rows: int):
    """Return (tile_rows, padded_rows).

    Prefer a tile that divides N exactly so the wrapper never has to pad x or
    slice the output (each would add a full HBM pass around a mem-bound op).
    """
    block_rows = max(8, _round_up(block_rows, 8))
    if n <= block_rows:
        tm = _round_up(n, 8)          # single tile; pad only if n % 8 != 0
        return tm, tm
    tm = block_rows                    # largest multiple-of-8 divisor <= block_rows
    while tm >= 64:
        if n % tm == 0:
            return tm, n
        tm -= 8
    return block_rows, _round_up(n, block_rows)   # no good divisor -> pad last tile


def _vmem_limit_bytes(needed: int) -> int:
    # Raise the scoped-VMEM cap only as far as needed (+25% headroom), clamped
    # to stay inside every generation's physical per-TC VMEM (v7x = 64 MiB).
    floor = 32 * 1024 * 1024
    cap = 60 * 1024 * 1024
    return int(min(cap, max(floor, needed * 5 // 4)))


# --------------------------------------------------------------------------
# Path 1: small vocab -- resident VMEM table, one-hot MXU gather (bit exact).
# --------------------------------------------------------------------------
def _onehot_add_kernel(tok_ref, x_ref, emb_ref, o_ref):
    """tok_ref (TM,1) i32 | x_ref (TM,D) f32 | emb_ref (V,D) f32 | o_ref (TM,D)."""
    tm = x_ref.shape[0]
    v = emb_ref.shape[0]

    idx = tok_ref[...]                                              # (TM, 1)
    vocab_iota = lax.broadcasted_iota(jnp.int32, (tm, v), 1)        # (TM, V)
    one_hot = (idx == vocab_iota).astype(jnp.float32)               # exact 0/1

    gathered = jnp.dot(one_hot, emb_ref[...],
                       preferred_element_type=jnp.float32)          # (TM, D)
    o_ref[...] = x_ref[...] + gathered.astype(o_ref.dtype)


# --------------------------------------------------------------------------
# Path 2: large vocab -- table in HBM, scalar-prefetched ids, DMA row gather.
# --------------------------------------------------------------------------
def _dma_gather_add_kernel(tok_smem, x_ref, emb_hbm, o_ref, gbuf, sem):
    """tok_smem (N,) i32 in SMEM | x_ref (TM,D) | emb_hbm (V,D) in HBM |
    o_ref (TM,D) | gbuf VMEM (TM,D) | sem: one shared DMA semaphore."""
    tm = x_ref.shape[0]
    base = pl.program_id(0) * tm

    # Issue one row DMA per token; copies run concurrently on the shared sem.
    @pl.loop(0, tm)
    def _(i):
        tok = tok_smem[base + i]
        pltpu.make_async_copy(
            emb_hbm.at[pl.ds(tok, 1), :], gbuf.at[pl.ds(i, 1), :], sem
        ).start()

    # Drain: all row copies are identical in size, so TM waits on the sem.
    @pl.loop(0, tm)
    def _(i):
        pltpu.make_async_copy(
            emb_hbm.at[pl.ds(0, 1), :], gbuf.at[pl.ds(0, 1), :], sem
        ).wait()

    o_ref[...] = x_ref[...] + gbuf[...]


# --------------------------------------------------------------------------
# Wrapper
# --------------------------------------------------------------------------
def learned_encoding(x, tokens, emb_weight, *, block_rows=512, onehot_max_vocab=256):
    """out[b, t, :] = x[b, t, :] + emb_weight[tokens[b, t], :]"""
    B, T, D = x.shape
    V, D2 = emb_weight.shape
    assert D2 == D, "embedding dim mismatch"
    N = B * T

    xb = jnp.dtype(x.dtype).itemsize
    eb = jnp.dtype(emb_weight.dtype).itemsize

    tm, n_pad = _choose_row_tile(N, block_rows)
    grid = (n_pad // tm,)

    x_flat = x.reshape(N, D)
    tok_flat = tokens.reshape(N).astype(jnp.int32)
    if n_pad != N:
        x_flat = jnp.pad(x_flat, ((0, n_pad - N), (0, 0)))
        tok_flat = jnp.pad(tok_flat, (0, n_pad - N))   # pad ids -> row 0 (discarded)

    if V <= onehot_max_vocab:
        # ---- resident table + one-hot MXU gather (small V only) ----
        tok_col = tok_flat.reshape(n_pad, 1)
        needed = (4 * tm * D * xb          # x + out, double-buffered
                  + 2 * V * D * eb         # resident table (default 2 buffers)
                  + 2 * tm * 4             # token column
                  + tm * V * 4)            # one-hot temporaries
        cost = pl.CostEstimate(
            flops=2 * n_pad * V * D + n_pad * D,
            transcendentals=0,
            bytes_accessed=2 * n_pad * D * xb + V * D * eb + n_pad * 4)
        out_flat = pl.pallas_call(
            _onehot_add_kernel,
            out_shape=jax.ShapeDtypeStruct((n_pad, D), x.dtype),
            grid_spec=pltpu.PrefetchScalarGridSpec(
                num_scalar_prefetch=0,
                grid=grid,
                in_specs=[
                    pl.BlockSpec((tm, 1), lambda i: (i, 0)),   # token ids per tile
                    pl.BlockSpec((tm, D), lambda i: (i, 0)),   # x tile
                    pl.BlockSpec((V, D), lambda i: (0, 0)),    # table, resident
                ],
                out_specs=pl.BlockSpec((tm, D), lambda i: (i, 0)),
            ),
            compiler_params=pltpu.CompilerParams(
                dimension_semantics=("parallel",),
                vmem_limit_bytes=_vmem_limit_bytes(needed)),
            cost_estimate=cost,
        )(tok_col, x_flat, emb_weight)
    else:
        # ---- HBM table + scalar-prefetched ids + per-row DMA gather ----
        needed = (4 * tm * D * xb          # x + out, double-buffered
                  + tm * D * eb            # gather scratch
                  + 4 * n_pad)             # ids in SMEM
        cost = pl.CostEstimate(
            flops=n_pad * D,
            transcendentals=0,
            bytes_accessed=2 * n_pad * D * xb + n_pad * D * eb + n_pad * 4)
        out_flat = pl.pallas_call(
            _dma_gather_add_kernel,
            out_shape=jax.ShapeDtypeStruct((n_pad, D), x.dtype),
            grid_spec=pltpu.PrefetchScalarGridSpec(
                num_scalar_prefetch=1,                        # token ids -> SMEM
                grid=grid,
                in_specs=[
                    pl.BlockSpec((tm, D), lambda i, tok: (i, 0)),   # x tile
                    pl.BlockSpec(memory_space=pl.ANY),              # table in HBM
                ],
                out_specs=pl.BlockSpec((tm, D), lambda i, tok: (i, 0)),
                scratch_shapes=[
                    pltpu.VMEM((tm, D), emb_weight.dtype),          # gathered rows
                    pltpu.SemaphoreType.DMA,                        # shared DMA sem
                ],
            ),
            compiler_params=pltpu.CompilerParams(
                dimension_semantics=("parallel",),
                vmem_limit_bytes=_vmem_limit_bytes(needed)),
            cost_estimate=cost,
        )(tok_flat, x_flat, emb_weight)

    if n_pad != N:
        out_flat = out_flat[:N]
    return out_flat.reshape(B, T, D)


if __name__ == "__main__":
    key = jax.random.PRNGKey(0)

    def run_case(B, T, D, V, case_key):
        k_x, k_tok, k_w = jax.random.split(case_key, 3)
        x = jax.random.normal(k_x, (B, T, D), dtype=jnp.float32)
        tokens = jax.random.randint(k_tok, (B, T), 0, V, dtype=jnp.int32)
        # nn.Embedding weight with .uniform_(-0.1, 0.1)
        emb_weight = jax.random.uniform(
            k_w, (V, D), dtype=jnp.float32, minval=-0.1, maxval=0.1)

        out = jax.block_until_ready(learned_encoding(x, tokens, emb_weight))
        ref = x + emb_weight[tokens]          # pure-JAX reference of the forward
        assert out.shape == (B, T, D)
        assert jnp.allclose(out, ref, atol=1e-6, rtol=1e-6), "mismatch vs reference"

    k1, k2 = jax.random.split(key)
    # Small vocab -> resident-table one-hot path.
    run_case(B=2, T=8, D=32, V=12, case_key=k1)
    # Larger vocab -> HBM table + scalar-prefetch + DMA-gather path.
    run_case(B=2, T=8, D=128, V=512, case_key=k2)

    print("KERNEL_OK")
</pallas_src>

<mosaic_0001>
module attributes {stable_mosaic.version = 11 : i64} {
  func.func @_onehot_add_kernel(%arg0: i32, %arg1: memref<16x1xi32, #tpu.memory_space<vmem>>, %arg2: memref<16x32xf32, #tpu.memory_space<vmem>>, %arg3: memref<12x32xf32, #tpu.memory_space<vmem>>, %arg4: memref<16x32xf32, #tpu.memory_space<vmem>>) attributes {dimension_semantics = [#tpu.dimension_semantics<parallel>], iteration_bounds = array<i64: 1>, scalar_prefetch = 0 : i64, scratch_operands = 0 : i64, tpu.core_type = #tpu.core_type<tc>, window_params = [{transform_indices = @transform_0, window_bounds = array<i64: 16, 1>}, {transform_indices = @transform_1, window_bounds = array<i64: 16, 32>}, {pipeline_mode = #tpu.pipeline_mode<synchronous>, transform_indices = @transform_2, window_bounds = array<i64: 12, 32>}, {transform_indices = @transform_3, window_bounds = array<i64: 16, 32>}]} {
    %c0 = arith.constant 0 : index
    %c0_0 = arith.constant 0 : index
    %0 = vector.load %arg1[%c0, %c0_0] : memref<16x1xi32, #tpu.memory_space<vmem>>, vector<16x1xi32>
    %1 = tpu.iota {dimensions = array<i32: 1>} : vector<16x12xi32>
    %2 = vector.broadcast %0 : vector<16x1xi32> to vector<16x12xi32>
    %3 = arith.cmpi eq, %2, %1 : vector<16x12xi32>
    %4 = arith.extui %3 : vector<16x12xi1> to vector<16x12xi32>
    %5 = arith.sitofp %4 : vector<16x12xi32> to vector<16x12xf32>
    %c0_1 = arith.constant 0 : index
    %c0_2 = arith.constant 0 : index
    %6 = vector.load %arg3[%c0_1, %c0_2] : memref<12x32xf32, #tpu.memory_space<vmem>>, vector<12x32xf32>
    %cst = arith.constant dense<0.000000e+00> : vector<16x32xf32>
    %7 = tpu.matmul %5, %6, %cst {dimension_numbers = #tpu.dot_dimension_numbers<[1], [0], [0], [1], [0, 0, 1, 1], [], []>} : vector<16x12xf32>, vector<12x32xf32>, vector<16x32xf32> -> vector<16x32xf32>
    %c0_3 = arith.constant 0 : index
    %c0_4 = arith.constant 0 : index
    %8 = vector.load %arg2[%c0_3, %c0_4] : memref<16x32xf32, #tpu.memory_space<vmem>>, vector<16x32xf32>
    %9 = arith.addf %8, %7 : vector<16x32xf32>
    %c0_5 = arith.constant 0 : index
    %c0_6 = arith.constant 0 : index
    %10 = vector.load %arg4[%c0_5, %c0_6] : memref<16x32xf32, #tpu.memory_space<vmem>>, vector<16x32xf32>
    tpu.vector_store %arg4[%c0_5, %c0_6], %9 {strides = array<i32>} : memref<16x32xf32, #tpu.memory_space<vmem>>, vector<16x32xf32>,
    return
  }
  func.func @transform_0(%arg0: i32) -> (i32, i32) {
    %c0_i32 = arith.constant 0 : i32
    %c0_i32_0 = arith.constant 0 : i32
    return %arg0, %c0_i32 : i32, i32
  }
  func.func @transform_1(%arg0: i32) -> (i32, i32) {
    %c0_i32 = arith.constant 0 : i32
    %c0_i32_0 = arith.constant 0 : i32
    return %arg0, %c0_i32 : i32, i32
  }
  func.func @transform_2(%arg0: i32) -> (i32, i32) {
    %c0_i32 = arith.constant 0 : i32
    %c0_i32_0 = arith.constant 0 : i32
    %c0_i32_1 = arith.constant 0 : i32
    return %c0_i32, %c0_i32_0 : i32, i32
  }
  func.func @transform_3(%arg0: i32) -> (i32, i32) {
    %c0_i32 = arith.constant 0 : i32
    %c0_i32_0 = arith.constant 0 : i32
    return %arg0, %c0_i32 : i32, i32
  }
}

</mosaic_0001>

<llo_original>
// kernel: tpu_custom_call.1
$region0: #{tpu_custom_call.1}
  #allocation0 [shape = 'u32[]', space=smem, size = 0x4, offset = 0x4, fixed_abs, tag = 'smem constant byte address 0x4 - core index']
  #allocation1 [shape = 'u32[144,128]{1,0:T(1,128)}', space=vmem, size = 0x12000, scoped, tag = 'internal scratch']
  %s0 = inlined_call_operand.vmem [shape: s32[16,1], index: 0, kind: input, shape index: {}]
  %s1 = inlined_call_operand.vmem [shape: f32[16,32], index: 1, kind: input, shape index: {}]
  %s2 = inlined_call_operand.hbm [shape: f32[12,32], index: 2, kind: input, shape index: {}]
  %s3 = inlined_call_operand.hbm [shape: f32[16,32], index: 3, kind: output, shape index: {}]
  %s4 = sld [smem:[#allocation0]]
  $region26: #{tpu_custom_call.1} parent=0
    _
  %s6 = ssub.s32 1, %s4
  %s7 = scalar_select 0, %s6, %s4
  $region1: #{tpu_custom_call.1} parent=0
    #allocation2 [shape = 'u8[8192]{0}', space=vmem, size = 0x2000, scoped, tag = 'input window, operand 2, single buffered']
    #allocation3 [shape = 's32[1]{0}', space=sflag, size = 0x4, scoped, tag = 'scoped memory for tpu_custom_call.1']
    #allocation4 [shape = 's32[1]{0}', space=sflag, size = 0x4, scoped, tag = 'scoped memory for tpu_custom_call.1']
    #allocation5 [shape = 'u8[8192]{0}', space=vmem, size = 0x2000, scoped, tag = 'output window, operand 0, single buffered']
    %8 = vsyncpa [#allocation3], 0
    %9 = vsyncpa [#allocation4], 0
    // Predicated region
    $region2: #{tpu_custom_call.1} parent=1 // pred_check
      _
    $region3: #{tpu_custom_call.1} parent=1 // pred_check_branch
      %11 = sbr.rel (0) target = $region5
    $region4: #{tpu_custom_call.1} parent=1 // pred_region
      _
    $region5: #{tpu_custom_call.1} parent=1 // pred_fallthru
      _
    // Predicated region
    $region6: #{tpu_custom_call.1} parent=1 // pred_check
      _
    $region7: #{tpu_custom_call.1} parent=1 // pred_check_branch
      %13 = sbr.rel (0) target = $region9
    $region8: #{tpu_custom_call.1} parent=1 // pred_region
      _
    $region9: #{tpu_custom_call.1} parent=1 // pred_fallthru
      _
    // Predicated region
    $region10: #{tpu_custom_call.1} parent=1 // pred_check
      _
    $region11: #{tpu_custom_call.1} parent=1 // pred_check_branch
      %15 = sbr.rel (0) target = $region13
    $region12: #{tpu_custom_call.1} parent=1 // pred_region
      %s17 = ssub.s32 256, 256
      %18 = vsyncadd [#allocation3], %s17
      %s19 = sshll.u32 [#allocation2], 4
      %s20 = int_to_ptr.vmem [resolvable:$true] %s19
      %25 = dma.hbm_to_vmem [thread:$0]  %s2, 256, %s20, [#allocation3], 128, 128, 8
    $region13: #{tpu_custom_call.1} parent=1 // pred_fallthru
      _
    // Predicated region
    $region14: #{tpu_custom_call.1} parent=1 // pred_check
      _
    $region15: #{tpu_custom_call.1} parent=1 // pred_check_branch
      %27 = sbr.rel (0) target = $region17
    $region16: #{tpu_custom_call.1} parent=1 // pred_region
      %28 = dma.done [#allocation3], 256
    $region17: #{tpu_custom_call.1} parent=1 // pred_fallthru
      _
    %v29 = vld [vmem:[%s0] sm:$0xff]
    %v30 = vld [vmem:[%s0 + $0x8] sm:$0xff]
    %v31 = vlaneseq
    %v32 = vand.u32 %v31, 127
    %33 = vset.pattern.permute.xlu0 0
    %34 = vperm.xlu0 %33, %v29
    %v35 = vpop.permute.xlu0 %34
    %36 = vset.pattern.permute.xlu0 0
    %37 = vperm.xlu0 %36, %v30
    %v38 = vpop.permute.xlu0 %37
    %vm39 = vcmp.eq.s32.totalorder %v35, %v32
    %vm40 = vcmp.eq.s32.totalorder %v38, %v32
    %v41 = vsel %vm39, 1, 0
    %v42 = vsel %vm40, 1, 0
    %v43 = vcvt.s32.f32 %v41
    %v44 = vcvt.s32.f32 %v42
    %v45 = vld [vmem:[#allocation2] sm:$0xff]
    %v46 = vld [vmem:[#allocation2 + $0x8] sm:$0xf]
    %vm47 = vcmask 97280
    %v49 = vsel %vm47, %v43, 0
    %v52 = vsel %vm47, %v44, 0
    %vm54 = vcmask 1043456
    %v56 = vsel %vm54, %v46, 0
    %58 = vmatprep.subr.mxu0 0.0
    %59 = vmatpush1.msra.mxu0 %v45
    %60 = vmatprep.subr.mxu0 0.0
    %61 = vmatpush1.msra.mxu0 %v56
    %62 = vmatprep.subr.mxu0 0.0
    %63 = vmatpush1.msra.mxu0 0.0
    %64 = vmatprep.subr.mxu0 0.0
    %65 = vmatpush1.msra.mxu0 0.0
    %66 = vmatprep.subr.mxu0 0.0
    %67 = vmatpush1.msra.mxu0 0.0
    %68 = vmatprep.subr.mxu0 0.0
    %69 = vmatpush1.msra.mxu0 0.0
    %70 = vmatprep.subr.mxu0 0.0
    %71 = vmatpush1.msra.mxu0 0.0
    %72 = vmatprep.subr.mxu0 0.0
    %73 = vmatpush1.msra.mxu0 0.0
    %74 = vmatprep.subr.mxu0 0.0
    %75 = vmatpush1.msra.mxu0 0.0
    %76 = vmatprep.subr.mxu0 0.0
    %77 = vmatpush1.msra.mxu0 0.0
    %78 = vmatprep.subr.mxu0 0.0
    %79 = vmatpush1.msra.mxu0 0.0
    %80 = vmatprep.subr.mxu0 0.0
    %81 = vmatpush1.msra.mxu0 0.0
    %82 = vmatprep.subr.mxu0 0.0
    %83 = vmatpush1.msra.mxu0 0.0
    %84 = vmatprep.subr.mxu0 0.0
    %85 = vmatpush1.msra.mxu0 0.0
    %86 = vmatprep.subr.mxu0 0.0
    %87 = vmatpush1.msra.mxu0 0.0
    %88 = vmatprep.subr.mxu0 0.0
    %89 = vmatpush1.msra.mxu0 0.0
    %90 = vmatprep.subr.mxu0 0.0
    %91 = vmatpush1.msra.mxu0 0.0
    %92 = vmatprep.subr.mxu0 0.0
    %93 = vmatpush1.msra.mxu0 0.0
    %94 = vmatprep.subr.mxu0 0.0
    %95 = vmatpush1.msra.mxu0 0.0
    %96 = vmatprep.subr.mxu0 0.0
    %97 = vmatpush1.msra.mxu0 0.0
    %98 = vmatprep.subr.mxu0 0.0
    %99 = vmatpush1.msra.mxu0 0.0
    %100 = vmatprep.subr.mxu0 0.0
    %101 = vmatpush1.msra.mxu0 0.0
    %102 = vmatprep.subr.mxu0 0.0
    %103 = vmatpush1.msra.mxu0 0.0
    %104 = vmatprep.subr.mxu0 0.0
    %105 = vmatpush1.msra.mxu0 0.0
    %106 = vmatprep.subr.mxu0 0.0
    %107 = vmatpush1.msra.mxu0 0.0
    %108 = vmatprep.subr.mxu0 0.0
    %109 = vmatpush1.msra.mxu0 0.0
    %110 = vmatprep.subr.mxu0 0.0
    %111 = vmatpush1.msra.mxu0 0.0
    %112 = vmatprep.subr.mxu0 0.0
    %113 = vmatpush1.msra.mxu0 0.0
    %114 = vmatprep.subr.mxu0 0.0
    %115 = vmatpush1.msra.mxu0 0.0
    %116 = vmatprep.subr.mxu0 0.0
    %117 = vmatpush1.msra.mxu0 0.0
    %118 = vmatprep.subr.mxu0 0.0
    %119 = vmatpush1.msra.mxu0 0.0
    %120 = vmatprep.subr.mxu0 0.0
    %121 = vmatpush1.msra.mxu0 0.0
    %122 = vmatprep.mubr.f32.mxu0 0.0
    %123 = vmatmul.mubr.f32.gmra.mrb[0].mxu0 %v49
    %v124 = vpop.f32.mrb[0].mxu0
    %v125 = vadd.f32 0.0, %v124
    %v126 = vpop.f32.mrb[0].mxu0
    %127 = vmatprep.mubr.f32.mxu0 0.0
    %128 = vmatmul.mubr.f32.gmra.mrb[0].mxu0 %v52
    %v129 = vpop.f32.mrb[0].mxu0
    %v130 = vadd.f32 0.0, %v129
    %v131 = vpop.f32.mrb[0].mxu0
    %132 = vdwg.mxu0
    %v133 = vld [vmem:[%s1] sm:$0xff]
    %v134 = vld [vmem:[%s1 + $0x8] sm:$0xff]
    %v135 = vadd.f32 %v133, %v125
    %v136 = vadd.f32 %v134, %v130
    %vm137 = vcmask 261120
    %138 = vst.msk [vmem:[#allocation5] sm:$0xff] %vm137, %v135
    %139 = vst.msk [vmem:[#allocation5 + $0x8] sm:$0xff] %vm137, %v136
    // Predicated region
    $region18: #{tpu_custom_call.1} parent=1 // pred_check
      _
    $region19: #{tpu_custom_call.1} parent=1 // pred_check_branch
      %141 = sbr.rel (0) target = $region21
    $region20: #{tpu_custom_call.1} parent=1 // pred_region
      %s143 = ssub.s32 256, 256
      %144 = vsyncadd [#allocation4], %s143
      %s145 = sshll.u32 [#allocation5], 4
      %s146 = int_to_ptr.vmem [resolvable:$true] %s145
      %151 = dma.vmem_to_hbm [thread:$0]  %s146, 256, %s3, [#allocation4], 128, 128, 8
    $region21: #{tpu_custom_call.1} parent=1 // pred_fallthru
      _
    // Predicated region
    $region22: #{tpu_custom_call.1} parent=1 // pred_check
      _
    $region23: #{tpu_custom_call.1} parent=1 // pred_check_branch
      %153 = sbr.rel (0) target = $region25
    $region24: #{tpu_custom_call.1} parent=1 // pred_region
      %154 = dma.done [#allocation4], 256
    $region25: #{tpu_custom_call.1} parent=1 // pred_fallthru
      _
    %155 = vsyncpa [#allocation3], 1
    %156 = vsyncpa [#allocation4], 1

</llo_original>
